<compile_context>
chip_gen: v6e
topology: v6e:2x2x1
jax: 0.10.0
libtpu: 0.0.40
codegen_flags: <defaults>
</compile_context>

<pallas_src>
import functools

import numpy as np
import jax
import jax.numpy as jnp
from jax import lax
from jax.experimental import pallas as pl
from jax.experimental.pallas import tpu as pltpu


def hamilton_kernel(xt_ref, wcat_ref, bcat_ref, rw_ref, nl2_ref, l1t_ref, o_ref,
                    *, mxu_dtype):
    """One batch-last tile: x^T (2d, TB) -> out^T (2d, TB)."""
    d2 = nl2_ref.shape[0]   # 2*dim
    d3 = nl2_ref.shape[1]   # 3*dim

    def mm(a, b):           # MXU matmul, f32 accumulation
        return lax.dot_general(a.astype(mxu_dtype), b.astype(mxu_dtype),
                               (((1,), (0,)), ((), ())),
                               preferred_element_type=jnp.float32)

    xt = xt_ref[...]                                          # (2d, TB)

    # Fused first layers of the H and W branches: one wide matmul + one tanh stream.
    a = jnp.tanh(mm(wcat_ref[...], xt) + bcat_ref[...])       # (5d, TB)
    dh = 1.0 - a[:d2, :] * a[:d2, :]                          # (2d, TB)  H-branch tanh'
    dw = 1.0 - a[d2:, :] * a[d2:, :]                          # (3d, TB)  W-branch tanh'

    # uw = [L1 g ; L2^T g]  with g = dH/dx folded into rw on the host.
    uw = mm(rw_ref[...], dh)                                  # (6d, TB)

    su = dw * uw[:d3, :]                                      # d ⊙ (L1 g)
    sw = dw * uw[d3:, :]                                      # d ⊙ (L2^T g)

    # out^T = -L2 (d ⊙ L1 g) + L1^T (d ⊙ L2^T g) = (J^T - J) g    (batch-last)
    o_ref[...] = (mm(nl2_ref[...], su) + mm(l1t_ref[...], sw)).astype(o_ref.dtype)
    # NOTE: reference b_inv() solves eye @ X = W -> returns W unchanged (no solve).


def _pick_tile_b(B, tile_b, num_cores):
    """Largest lane-dense (multiple-of-128) batch tile that still leaves at least
    `num_cores` grid steps, so v7x's two TensorCores both get work."""
    if B <= 128:
        return B                                   # single full block (full-dim OK)
    tb = max(128, (min(tile_b, B) // 128) * 128)
    while tb > 128 and pl.cdiv(B, tb) < num_cores:
        tb = max(128, ((tb // 2) // 128) * 128)
    return tb


def hamilton_v8_forward(t, x, params, *, tile_b=2048, num_cores=2,
                        mxu_dtype=jnp.float32):
    # t is unused (matches the PyTorch forward signature).
    del t
    w1h, b1h, w2h, l1, b1w, l2 = params
    B, D2 = x.shape
    D3 = l1.shape[0]
    dim = D2 // 2

    # ---- host-side weight fusion (trace-time, runs once) ----
    wcat = jnp.concatenate([w1h, l1], axis=0)                  # (5d, 2d)
    bcat = jnp.concatenate([b1h, b1w]).reshape(-1, 1)          # (5d, 1)
    w1s_t = w1h.T * w2h.reshape(1, -1)                         # (2d, 2d) = (diag(w2h) @ w1h)^T
    rw = jnp.concatenate([l1, l2.T], axis=0) @ w1s_t           # (6d, 2d): uw = rw @ dH
    nl2 = -l2                                                  # (2d, 3d)
    l1t = l1.T                                                 # (2d, 3d)
    if mxu_dtype != jnp.float32:
        wcat, rw, nl2, l1t = (a.astype(mxu_dtype) for a in (wcat, rw, nl2, l1t))

    tb = _pick_tile_b(B, tile_b, num_cores)
    grid = (pl.cdiv(B, tb),)

    # Batch-last layout: the batch tile sits in the 128-lane dimension in-kernel.
    x_t = x.T                                                  # (2d, B)

    def const_spec(arr):
        # Full-array block, constant index -> stays VMEM-resident across grid steps.
        return pl.BlockSpec(arr.shape, lambda i: (0,) * arr.ndim)

    flops = 2 * B * (5 * dim * D2 + 6 * dim * D2 + 2 * D2 * D3)
    weights_bytes = sum(int(a.size) * a.dtype.itemsize
                        for a in (wcat, bcat, rw, nl2, l1t))
    cost = pl.CostEstimate(flops=flops,
                           transcendentals=5 * dim * B,
                           bytes_accessed=8 * B * D2 + weights_bytes)

    out_t = pl.pallas_call(
        functools.partial(hamilton_kernel, mxu_dtype=mxu_dtype),
        out_shape=jax.ShapeDtypeStruct((D2, B), jnp.float32),
        grid=grid,
        in_specs=[
            pl.BlockSpec((D2, tb), lambda i: (0, i)),          # x^T: batch(lane)-tiled
            const_spec(wcat), const_spec(bcat), const_spec(rw),
            const_spec(nl2), const_spec(l1t),
        ],
        out_specs=pl.BlockSpec((D2, tb), lambda i: (0, i)),
        compiler_params=pltpu.CompilerParams(
            dimension_semantics=("parallel",),                 # shard batch over TCs (v7x)
        ),
        cost_estimate=cost,
    )(x_t, wcat, bcat, rw, nl2, l1t)

    return out_t.T                                             # back to (B, 2d)


def _init_linear(key, out_f, in_f):
    # Deterministic PyTorch-style init: U(-1/sqrt(fan_in), 1/sqrt(fan_in)).
    kw, kb = jax.random.split(key)
    bound = 1.0 / np.sqrt(in_f)
    w = jax.random.uniform(kw, (out_f, in_f), jnp.float32, -bound, bound)
    b = jax.random.uniform(kb, (out_f,), jnp.float32, -bound, bound)
    return w, b


def _reference(x, params):
    # Pure-JAX reference of the same math (analytic Jacobians, unfused).
    w1h, b1h, w2h, l1, b1w, l2 = params
    aH = jnp.tanh(x @ w1h.T + b1h)
    gH = ((1.0 - aH ** 2) * w2h[0]) @ w1h                      # (B, 2d)
    aW = jnp.tanh(x @ l1.T + b1w)
    dW = 1.0 - aW ** 2                                         # (B, 3d)
    J = jnp.einsum('ik,bk,kj->bij', l2, dW, l1)                # (B, 2d, 2d)
    A = jnp.transpose(J, (0, 2, 1)) - J
    return jnp.einsum('bij,bj->bi', A, gH)


if __name__ == "__main__":
    dim = 16                  # size_in of Hamilton_V8
    D2, D3 = 2 * dim, 3 * dim
    B = 256                   # small test batch; picker gives TILE_B=128, grid=2

    key = jax.random.PRNGKey(0)
    kx, k1, k2, k3, k4 = jax.random.split(key, 5)

    x = jax.random.normal(kx, (B, D2), jnp.float32)

    # H = myLinear(dim): Linear(2d->2d), Linear(2d->1)
    w1h, b1h = _init_linear(k1, D2, D2)
    w2h, b2h = _init_linear(k2, 1, D2)        # b2h drops out of the Jacobian
    # W = myLinear_W(dim): Linear(2d->3d), Linear(3d->2d)
    l1, b1w = _init_linear(k3, D3, D2)
    l2, b2w = _init_linear(k4, D2, D3)        # b2w drops out of the Jacobian

    params = (w1h, b1h, w2h, l1, b1w, l2)
    ref = _reference(x, params)

    # f32 path (exact module semantics).
    out = jax.block_until_ready(hamilton_v8_forward(0.0, x, params))
    np.testing.assert_allclose(np.asarray(out), np.asarray(ref), rtol=1e-4, atol=1e-4)

    # bf16-MXU fast path (v6e/v7x): f32 accumulation, looser tolerance.
    out_bf16 = jax.block_until_ready(
        hamilton_v8_forward(0.0, x, params, mxu_dtype=jnp.bfloat16))
    np.testing.assert_allclose(np.asarray(out_bf16), np.asarray(ref),
                               rtol=5e-2, atol=1e-2)

    print("KERNEL_OK")
</pallas_src>

<mosaic_0001>
module attributes {stable_mosaic.version = 11 : i64} {
  func.func @hamilton_kernel(%arg0: i32, %arg1: memref<32x128xf32, #tpu.memory_space<vmem>>, %arg2: memref<80x32xf32, #tpu.memory_space<vmem>>, %arg3: memref<80x1xf32, #tpu.memory_space<vmem>>, %arg4: memref<96x32xf32, #tpu.memory_space<vmem>>, %arg5: memref<32x48xf32, #tpu.memory_space<vmem>>, %arg6: memref<32x48xf32, #tpu.memory_space<vmem>>, %arg7: memref<32x128xf32, #tpu.memory_space<vmem>>) attributes {dimension_semantics = [#tpu.dimension_semantics<parallel>], iteration_bounds = array<i64: 2>, scalar_prefetch = 0 : i64, scratch_operands = 0 : i64, tpu.core_type = #tpu.core_type<tc>, window_params = [{transform_indices = @transform_0, window_bounds = array<i64: 32, 128>}, {pipeline_mode = #tpu.pipeline_mode<synchronous>, transform_indices = @transform_1, window_bounds = array<i64: 80, 32>}, {pipeline_mode = #tpu.pipeline_mode<synchronous>, transform_indices = @transform_2, window_bounds = array<i64: 80, 1>}, {pipeline_mode = #tpu.pipeline_mode<synchronous>, transform_indices = @transform_3, window_bounds = array<i64: 96, 32>}, {pipeline_mode = #tpu.pipeline_mode<synchronous>, transform_indices = @transform_4, window_bounds = array<i64: 32, 48>}, {pipeline_mode = #tpu.pipeline_mode<synchronous>, transform_indices = @transform_5, window_bounds = array<i64: 32, 48>}, {transform_indices = @transform_6, window_bounds = array<i64: 32, 128>}]} {
    %c0 = arith.constant 0 : index
    %c0_0 = arith.constant 0 : index
    %0 = vector.load %arg1[%c0, %c0_0] : memref<32x128xf32, #tpu.memory_space<vmem>>, vector<32x128xf32>
    %c0_1 = arith.constant 0 : index
    %c0_2 = arith.constant 0 : index
    %1 = vector.load %arg2[%c0_1, %c0_2] : memref<80x32xf32, #tpu.memory_space<vmem>>, vector<80x32xf32>
    %cst = arith.constant dense<0.000000e+00> : vector<80x128xf32>
    %2 = tpu.matmul %1, %0, %cst {dimension_numbers = #tpu.dot_dimension_numbers<[1], [0], [0], [1], [0, 0, 1, 1], [], []>} : vector<80x32xf32>, vector<32x128xf32>, vector<80x128xf32> -> vector<80x128xf32>
    %c0_3 = arith.constant 0 : index
    %c0_4 = arith.constant 0 : index
    %3 = vector.load %arg3[%c0_3, %c0_4] : memref<80x1xf32, #tpu.memory_space<vmem>>, vector<80x1xf32>
    %4 = vector.broadcast %3 : vector<80x1xf32> to vector<80x128xf32>
    %5 = arith.addf %2, %4 : vector<80x128xf32>
    %6 = math.tanh %5 : vector<80x128xf32>
    %7 = vector.extract_strided_slice %6 {offsets = [0, 0], sizes = [32, 128], strides = [1, 1]} : vector<80x128xf32> to vector<32x128xf32>
    %8 = vector.extract_strided_slice %6 {offsets = [0, 0], sizes = [32, 128], strides = [1, 1]} : vector<80x128xf32> to vector<32x128xf32>
    %9 = arith.mulf %7, %8 : vector<32x128xf32>
    %cst_5 = arith.constant 1.000000e+00 : f32
    %10 = vector.broadcast %cst_5 : f32 to vector<32x128xf32>
    %11 = arith.subf %10, %9 : vector<32x128xf32>
    %12 = vector.extract_strided_slice %6 {offsets = [32, 0], sizes = [48, 128], strides = [1, 1]} : vector<80x128xf32> to vector<48x128xf32>
    %13 = vector.extract_strided_slice %6 {offsets = [32, 0], sizes = [48, 128], strides = [1, 1]} : vector<80x128xf32> to vector<48x128xf32>
    %14 = arith.mulf %12, %13 : vector<48x128xf32>
    %cst_6 = arith.constant 1.000000e+00 : f32
    %15 = vector.broadcast %cst_6 : f32 to vector<48x128xf32>
    %16 = arith.subf %15, %14 : vector<48x128xf32>
    %c0_7 = arith.constant 0 : index
    %c0_8 = arith.constant 0 : index
    %17 = vector.load %arg4[%c0_7, %c0_8] : memref<96x32xf32, #tpu.memory_space<vmem>>, vector<96x32xf32>
    %cst_9 = arith.constant dense<0.000000e+00> : vector<96x128xf32>
    %18 = tpu.matmul %17, %11, %cst_9 {dimension_numbers = #tpu.dot_dimension_numbers<[1], [0], [0], [1], [0, 0, 1, 1], [], []>} : vector<96x32xf32>, vector<32x128xf32>, vector<96x128xf32> -> vector<96x128xf32>
    %19 = vector.extract_strided_slice %18 {offsets = [0, 0], sizes = [48, 128], strides = [1, 1]} : vector<96x128xf32> to vector<48x128xf32>
    %20 = arith.mulf %16, %19 : vector<48x128xf32>
    %21 = vector.extract_strided_slice %18 {offsets = [48, 0], sizes = [48, 128], strides = [1, 1]} : vector<96x128xf32> to vector<48x128xf32>
    %22 = arith.mulf %16, %21 : vector<48x128xf32>
    %c0_10 = arith.constant 0 : index
    %c0_11 = arith.constant 0 : index
    %23 = vector.load %arg5[%c0_10, %c0_11] : memref<32x48xf32, #tpu.memory_space<vmem>>, vector<32x48xf32>
    %cst_12 = arith.constant dense<0.000000e+00> : vector<32x128xf32>
    %24 = tpu.matmul %23, %20, %cst_12 {dimension_numbers = #tpu.dot_dimension_numbers<[1], [0], [0], [1], [0, 0, 1, 1], [], []>} : vector<32x48xf32>, vector<48x128xf32>, vector<32x128xf32> -> vector<32x128xf32>
    %c0_13 = arith.constant 0 : index
    %c0_14 = arith.constant 0 : index
    %25 = vector.load %arg6[%c0_13, %c0_14] : memref<32x48xf32, #tpu.memory_space<vmem>>, vector<32x48xf32>
    %cst_15 = arith.constant dense<0.000000e+00> : vector<32x128xf32>
    %26 = tpu.matmul %25, %22, %cst_15 {dimension_numbers = #tpu.dot_dimension_numbers<[1], [0], [0], [1], [0, 0, 1, 1], [], []>} : vector<32x48xf32>, vector<48x128xf32>, vector<32x128xf32> -> vector<32x128xf32>
    %27 = arith.addf %24, %26 : vector<32x128xf32>
    %c0_16 = arith.constant 0 : index
    %c0_17 = arith.constant 0 : index
    %28 = vector.load %arg7[%c0_16, %c0_17] : memref<32x128xf32, #tpu.memory_space<vmem>>, vector<32x128xf32>
    tpu.vector_store %arg7[%c0_16, %c0_17], %27 {strides = array<i32>} : memref<32x128xf32, #tpu.memory_space<vmem>>, vector<32x128xf32>,
    return
  }
  func.func @transform_0(%arg0: i32) -> (i32, i32) {
    %c0_i32 = arith.constant 0 : i32
    %c0_i32_0 = arith.constant 0 : i32
    return %c0_i32, %arg0 : i32, i32
  }
  func.func @transform_1(%arg0: i32) -> (i32, i32) {
    %c0_i32 = arith.constant 0 : i32
    %c0_i32_0 = arith.constant 0 : i32
    %c0_i32_1 = arith.constant 0 : i32
    return %c0_i32, %c0_i32_0 : i32, i32
  }
  func.func @transform_2(%arg0: i32) -> (i32, i32) {
    %c0_i32 = arith.constant 0 : i32
    %c0_i32_0 = arith.constant 0 : i32
    %c0_i32_1 = arith.constant 0 : i32
    return %c0_i32, %c0_i32_0 : i32, i32
  }
  func.func @transform_3(%arg0: i32) -> (i32, i32) {
    %c0_i32 = arith.constant 0 : i32
    %c0_i32_0 = arith.constant 0 : i32
    %c0_i32_1 = arith.constant 0 : i32
    return %c0_i32, %c0_i32_0 : i32, i32
  }
  func.func @transform_4(%arg0: i32) -> (i32, i32) {
    %c0_i32 = arith.constant 0 : i32
    %c0_i32_0 = arith.constant 0 : i32
    %c0_i32_1 = arith.constant 0 : i32
    return %c0_i32, %c0_i32_0 : i32, i32
  }
  func.func @transform_5(%arg0: i32) -> (i32, i32) {
    %c0_i32 = arith.constant 0 : i32
    %c0_i32_0 = arith.constant 0 : i32
    %c0_i32_1 = arith.constant 0 : i32
    return %c0_i32, %c0_i32_0 : i32, i32
  }
  func.func @transform_6(%arg0: i32) -> (i32, i32) {
    %c0_i32 = arith.constant 0 : i32
    %c0_i32_0 = arith.constant 0 : i32
    return %c0_i32, %arg0 : i32, i32
  }
}

</mosaic_0001>

<llo_original>
// kernel: tpu_custom_call.1
$region0: #{tpu_custom_call.1}
  #allocation0 [shape = 'u32[]', space=smem, size = 0x4, offset = 0x4, fixed_abs, tag = 'smem constant byte address 0x4 - core index']
  #allocation1 [shape = 'u32[144,128]{1,0:T(1,128)}', space=vmem, size = 0x12000, scoped, tag = 'internal scratch']
  %s0 = inlined_call_operand.vmem [shape: f32[32,256], index: 0, kind: input, shape index: {}]
  %s1 = inlined_call_operand.vmem [shape: f32[80,32], index: 1, kind: input, shape index: {}]
  %s2 = inlined_call_operand.vmem [shape: f32[80,1], index: 2, kind: input, shape index: {}]
  %s3 = inlined_call_operand.vmem [shape: f32[96,32], index: 3, kind: input, shape index: {}]
  %s4 = inlined_call_operand.vmem [shape: f32[32,48], index: 4, kind: input, shape index: {}]
  %s5 = inlined_call_operand.vmem [shape: f32[32,48], index: 5, kind: input, shape index: {}]
  %s6 = inlined_call_operand.hbm [shape: f32[32,256], index: 6, kind: output, shape index: {}]
  %s7 = sld [smem:[#allocation0]]
  $region95: #{tpu_custom_call.1} parent=0
    _
  %s9 = ssub.s32 1, %s7
  %s10 = scalar_select 0, %s9, %s7
  $region1: #{tpu_custom_call.1} parent=0
    #allocation2 [shape = 'u8[32768]{0}', space=vmem, size = 0x8000, scoped, tag = 'input window, operand 0']
    #allocation3 [shape = 'u8[32768]{0}', space=vmem, size = 0x8000, scoped, tag = 'output window, operand 0']
    #allocation4 [shape = 's32[2]{0}', space=sflag, size = 0x8, scoped, tag = 'scoped memory for tpu_custom_call.1']
    %11 = vsyncpa [#allocation4], 0
    %s12 = scalar_lea.sflag [#allocation4], 1
    %13 = vsyncpa %s12, 0
    loop: start=0, step=1, limit=4
    $region2: #{tpu_custom_call.1} parent=1 // loop_pre_header
      _
    $region3: #{tpu_custom_call.1} parent=1 // loop_header
      %s15 = sphi 0, %s19
      %p16 = scmp.ge.s32.totalorder %s15, 4
      %s25 = sphi 0, %s27
      %s28 = sphi 0, %s25
      %s29 = sphi 0, %s28
      %s45 = sphi 0, %s29
      %s49 = sphi 0, %s49
      %s51 = sphi 0, %s49
      %s52 = sphi 0, %s51
      %s66 = sphi 0, %s52
      %s70 = sphi 0, %s70
      %s72 = sphi 0, %s70
      %s73 = sphi 0, %s72
      %s87 = sphi 0, %s73
      %s91 = sphi 0, %s91
      %s93 = sphi 0, %s91
      %s94 = sphi 0, %s93
      %s108 = sphi 0, %s94
      %s112 = sphi 0, %s112
      %s114 = sphi 0, %s112
      %s115 = sphi 0, %s114
      %s129 = sphi 0, %s115
      %s133 = sphi 0, %s133
      %s135 = sphi 0, %s133
      %s136 = sphi 0, %s135
      %s150 = sphi 0, %s136
      %s156 = sphi 0, %s158
      %s159 = sphi 0, %s156
      %s160 = sphi 0, %s159
      %s176 = sphi 0, %s160
    $region4: #{tpu_custom_call.1} parent=1 // loop_header_branch
      %18 = sbr.rel (%p16) target = $region8
    $region5: #{tpu_custom_call.1} parent=1 // loop_body
      %s20 = ssub.s32 %s15, 1
      %s21 = ssub.s32 %s15, 2
      %s22 = sadd.s32 %s15, 1
      %s23 = ssub.s32 %s15, %s22
      %p24 = scmp.eq.s32.totalorder %s23, 0
      %s26 = sadd.s32 %s25, 1
      %s27 = scalar_select %p24, %s25, %s26
      %p30 = pneg %p24
      %p31 = scmp.eq.s32.totalorder %s15, 1
      %p32 = por %p30, %p31
      %p33 = scmp.ne.s32.totalorder %s25, %s28
      %p34 = scmp.eq.s32.totalorder %s15, 0
      %p35 = por %p33, %p34
      %p36 = scmp.ne.s32.totalorder %s25, %s28
      %p37 = scmp.eq.s32.totalorder %s20, 1
      %p38 = por %p36, %p37
      %p39 = scmp.ne.s32.totalorder %s28, %s29
      %p40 = scmp.eq.s32.totalorder %s20, 0
      %p41 = por %p39, %p40
      %p42 = scmp.ne.s32.totalorder %s28, %s29
      %p43 = scmp.eq.s32.totalorder %s21, 1
      %p44 = por %p42, %p43
      %p46 = scmp.ne.s32.totalorder %s29, %s45
      %p47 = scmp.eq.s32.totalorder %s21, 0
      %p48 = por %p46, %p47
      %s50 = sadd.s32 %s49, 1
      %p53 = scmp.eq.s32.totalorder %s15, 1
      %p54 = scmp.ne.s32.totalorder %s49, %s51
      %p55 = scmp.eq.s32.totalorder %s15, 0
      %p56 = por %p54, %p55
      %p57 = scmp.ne.s32.totalorder %s49, %s51
      %p58 = scmp.eq.s32.totalorder %s20, 1
      %p59 = por %p57, %p58
      %p60 = scmp.ne.s32.totalorder %s51, %s52
      %p61 = scmp.eq.s32.totalorder %s20, 0
      %p62 = por %p60, %p61
      %p63 = scmp.ne.s32.totalorder %s51, %s52
      %p64 = scmp.eq.s32.totalorder %s21, 1
      %p65 = por %p63, %p64
      %p67 = scmp.ne.s32.totalorder %s52, %s66
      %p68 = scmp.eq.s32.totalorder %s21, 0
      %p69 = por %p67, %p68
      %s71 = sadd.s32 %s70, 1
      %p74 = scmp.eq.s32.totalorder %s15, 1
      %p75 = scmp.ne.s32.totalorder %s70, %s72
      %p76 = scmp.eq.s32.totalorder %s15, 0
      %p77 = por %p75, %p76
      %p78 = scmp.ne.s32.totalorder %s70, %s72
      %p79 = scmp.eq.s32.totalorder %s20, 1
      %p80 = por %p78, %p79
      %p81 = scmp.ne.s32.totalorder %s72, %s73
      %p82 = scmp.eq.s32.totalorder %s20, 0
      %p83 = por %p81, %p82
      %p84 = scmp.ne.s32.totalorder %s72, %s73
      %p85 = scmp.eq.s32.totalorder %s21, 1
      %p86 = por %p84, %p85
      %p88 = scmp.ne.s32.totalorder %s73, %s87
      %p89 = scmp.eq.s32.totalorder %s21, 0
      %p90 = por %p88, %p89
      %s92 = sadd.s32 %s91, 1
      %p95 = scmp.eq.s32.totalorder %s15, 1
      %p96 = scmp.ne.s32.totalorder %s91, %s93
      %p97 = scmp.eq.s32.totalorder %s15, 0
      %p98 = por %p96, %p97
      %p99 = scmp.ne.s32.totalorder %s91, %s93
      %p100 = scmp.eq.s32.totalorder %s20, 1
      %p101 = por %p99, %p100
      %p102 = scmp.ne.s32.totalorder %s93, %s94
      %p103 = scmp.eq.s32.totalorder %s20, 0
      %p104 = por %p102, %p103
      %p105 = scmp.ne.s32.totalorder %s93, %s94
      %p106 = scmp.eq.s32.totalorder %s21, 1
      %p107 = por %p105, %p106
      %p109 = scmp.ne.s32.totalorder %s94, %s108
      %p110 = scmp.eq.s32.totalorder %s21, 0
      %p111 = por %p109, %p110
      %s113 = sadd.s32 %s112, 1
      %p116 = scmp.eq.s32.totalorder %s15, 1
      %p117 = scmp.ne.s32.totalorder %s112, %s114
      %p118 = scmp.eq.s32.totalorder %s15, 0
      %p119 = por %p117, %p118
      %p120 = scmp.ne.s32.totalorder %s112, %s114
      %p121 = scmp.eq.s32.totalorder %s20, 1
      %p122 = por %p120, %p121
      %p123 = scmp.ne.s32.totalorder %s114, %s115
      %p124 = scmp.eq.s32.totalorder %s20, 0
      %p125 = por %p123, %p124
      %p126 = scmp.ne.s32.totalorder %s114, %s115
      %p127 = scmp.eq.s32.totalorder %s21, 1
      %p128 = por %p126, %p127
      %p130 = scmp.ne.s32.totalorder %s115, %s129
      %p131 = scmp.eq.s32.totalorder %s21, 0
      %p132 = por %p130, %p131
      %s134 = sadd.s32 %s133, 1
      %p137 = scmp.eq.s32.totalorder %s15, 1
      %p138 = scmp.ne.s32.totalorder %s133, %s135
      %p139 = scmp.eq.s32.totalorder %s15, 0
      %p140 = por %p138, %p139
      %p141 = scmp.ne.s32.totalorder %s133, %s135
      %p142 = scmp.eq.s32.totalorder %s20, 1
      %p143 = por %p141, %p142
      %p144 = scmp.ne.s32.totalorder %s135, %s136
      %p145 = scmp.eq.s32.totalorder %s20, 0
      %p146 = por %p144, %p145
      %p147 = scmp.ne.s32.totalorder %s135, %s136
      %p148 = scmp.eq.s32.totalorder %s21, 1
      %p149 = por %p147, %p148
      %p151 = scmp.ne.s32.totalorder %s136, %s150
      %p152 = scmp.eq.s32.totalorder %s21, 0
      %p153 = por %p151, %p152
      %s154 = ssub.s32 %s15, %s22
      %p155 = scmp.eq.s32.totalorder %s154, 0
      %s157 = sadd.s32 %s156, 1
      %s158 = scalar_select %p155, %s156, %s157
      %p161 = pneg %p155
      %p162 = scmp.eq.s32.totalorder %s15, 1
      %p163 = por %p161, %p162
      %p164 = scmp.ne.s32.totalorder %s156, %s159
      %p165 = scmp.eq.s32.totalorder %s15, 0
      %p166 = por %p164, %p165
      %p167 = scmp.ne.s32.totalorder %s156, %s159
      %p168 = scmp.eq.s32.totalorder %s20, 1
      %p169 = por %p167, %p168
      %p170 = scmp.ne.s32.totalorder %s159, %s160
      %p171 = scmp.eq.s32.totalorder %s20, 0
      %p172 = por %p170, %p171
      %p173 = scmp.ne.s32.totalorder %s159, %s160
      %p174 = scmp.eq.s32.totalorder %s21, 1
      %p175 = por %p173, %p174
      %p177 = scmp.ne.s32.totalorder %s160, %s176
      %p178 = scmp.eq.s32.totalorder %s21, 0
      %p179 = por %p177, %p178
      %p180 = scmp.le.s32.totalorder 1, %s15
      %p181 = scmp.lt.s32.totalorder %s15, 3
      %p182 = pnand %p180, %p181
      %p183 = pneg %p182
      // Predicated region
      $region9: #{tpu_custom_call.1} parent=5 // pred_check
        _
      $region10: #{tpu_custom_call.1} parent=5 // pred_check_branch
        %185 = sbr.rel (%p182) target = $region12
      $region11: #{tpu_custom_call.1} parent=5 // pred_region
        %s186 = ssub.s32 %s15, 1
        // Predicated region
        $region13: #{tpu_custom_call.1} parent=11 // pred_check
          %p187 = pneg %p62
        $region14: #{tpu_custom_call.1} parent=11 // pred_check_branch
          %189 = sbr.rel (%p187) target = $region16
        $region15: #{tpu_custom_call.1} parent=11 // pred_region
          _
        $region16: #{tpu_custom_call.1} parent=11 // pred_fallthru
          _
        // Predicated region
        $region17: #{tpu_custom_call.1} parent=11 // pred_check
          %p190 = pneg %p83
        $region18: #{tpu_custom_call.1} parent=11 // pred_check_branch
          %192 = sbr.rel (%p190) target = $region20
        $region19: #{tpu_custom_call.1} parent=11 // pred_region
          _
        $region20: #{tpu_custom_call.1} parent=11 // pred_fallthru
          _
        // Predicated region
        $region21: #{tpu_custom_call.1} parent=11 // pred_check
          %p193 = pneg %p104
        $region22: #{tpu_custom_call.1} parent=11 // pred_check_branch
          %195 = sbr.rel (%p193) target = $region24
        $region23: #{tpu_custom_call.1} parent=11 // pred_region
          _
        $region24: #{tpu_custom_call.1} parent=11 // pred_fallthru
          _
        // Predicated region
        $region25: #{tpu_custom_call.1} parent=11 // pred_check
          %p196 = pneg %p125
        $region26: #{tpu_custom_call.1} parent=11 // pred_check_branch
          %198 = sbr.rel (%p196) target = $region28
        $region27: #{tpu_custom_call.1} parent=11 // pred_region
          _
        $region28: #{tpu_custom_call.1} parent=11 // pred_fallthru
          _
        // Predicated region
        $region29: #{tpu_custom_call.1} parent=11 // pred_check
          %p199 = pneg %p146
        $region30: #{tpu_custom_call.1} parent=11 // pred_check_branch
          %201 = sbr.rel (%p199) target = $region32
        $region31: #{tpu_custom_call.1} parent=11 // pred_region
          _
        $region32: #{tpu_custom_call.1} parent=11 // pred_fallthru
          _
      $region12: #{tpu_custom_call.1} parent=5 // pred_fallthru
        _
      %p202 = scmp.lt.s32.totalorder %s15, 2
      // Predicated region
      $region33: #{tpu_custom_call.1} parent=5 // pred_check
        %p203 = pneg %p202
      $region34: #{tpu_custom_call.1} parent=5 // pred_check_branch
        %205 = sbr.rel (%p203) target = $region36
      $region35: #{tpu_custom_call.1} parent=5 // pred_region
        // Predicated region
        $region37: #{tpu_custom_call.1} parent=35 // pred_check
          %p206 = pneg %p35
        $region38: #{tpu_custom_call.1} parent=35 // pred_check_branch
          %208 = sbr.rel (%p206) target = $region40
        $region39: #{tpu_custom_call.1} parent=35 // pred_region
          %s209 = sand.u32 %s25, 1
          %s210 = sand.u32 %s25, 1
          %s211 = smul.addr %s210, 32
          %s212 = scalar_lea.vmem [#allocation2], %s211
          %s213 = smul.addr %s15, 8
          %s214 = scalar_lea.vmem %s0, %s213
          // Predicated region
          $region41: #{tpu_custom_call.1} parent=39 // pred_check
            _
          $region42: #{tpu_custom_call.1} parent=39 // pred_check_branch
            %216 = sbr.rel (0) target = $region44
          $region43: #{tpu_custom_call.1} parent=39 // pred_region
            // Predicated region
            $region45: #{tpu_custom_call.1} parent=43 // pred_check
              _
            $region46: #{tpu_custom_call.1} parent=43 // pred_check_branch
              %218 = sbr.rel (0) target = $region48
            $region47: #{tpu_custom_call.1} parent=43 // pred_region
              // Predicated region
              $region60: #{tpu_custom_call.1} parent=47 // pred_check
                _
              $region61: #{tpu_custom_call.1} parent=47 // pred_check_branch
                %240 = sbr.rel (0) target = $region63
              $region62: #{tpu_custom_call.1} parent=47 // pred_region
                loop: start=0, step=1, limit=1
                $region64: #{tpu_custom_call.1} parent=62 // loop_pre_header
                  _
                $region65: #{tpu_custom_call.1} parent=62 // loop_header
                  %s242 = sphi 0, %s246
                  %p243 = scmp.ge.s32.totalorder %s242, 1
                  %s247 = sphi %s214, %s214
                  %s248 = sphi %s212, %s212
                $region66: #{tpu_custom_call.1} parent=62 // loop_header_branch
                  %245 = sbr.rel (%p243) target = $region70
                $region67: #{tpu_custom_call.1} parent=62 // loop_body
                  %v249 = vld [vmem:[%s247] sm:$0xff]
                  %250 = vst [vmem:[%s248] sm:$0xff] %v249
                  %v251 = vld [vmem:[%s247 + $0x10] sm:$0xff]
                  %252 = vst [vmem:[%s248 + $0x8] sm:$0xff] %v251
                  %v253 = vld [vmem:[%s247 + $0x20] sm:$0xff]
                  %254 = vst [vmem:[%s248 + $0x10] sm:$0xff] %v253
                  %v255 = vld [vmem:[%s247 + $0x30] sm:$0xff]
                  %256 = vst [vmem:[%s248 + $0x18] sm:$0xff] %v255
                $region68: #{tpu_custom_call.1} parent=62 // loop_footer
                  %s246 = sadd.s32 1, %s242
                $region69: #{tpu_custom_call.1} parent=62 // loop_footer_branch
                  %241 = sbr.rel target = $region65
                $region70: #{tpu_custom_call.1} parent=62 // loop_exit
                  _
              $region63: #{tpu_custom_call.1} parent=47 // pred_fallthru
                _
              // Predicated region
              $region71: #{tpu_custom_call.1} parent=47 // pred_check
                _
              $region72: #{tpu_custom_call.1} parent=47 // pred_check_branch
                %258 = sbr.rel target = $region74
              $region73: #{tpu_custom_call.1} parent=47 // pred_region
                _
              $region74: #{tpu_custom_call.1} parent=47 // pred_fallthru
                _
            $region48: #{tpu_custom_call.1} parent=43 // pred_fallthru
              _
            // Predicated region
            $region49: #{tpu_custom_call.1} parent=43 // pred_check
              _
            $region50: #{tpu_custom_call.1} parent=43 // pred_check_branch
              %220 = sbr.rel target = $region52
            $region51: #{tpu_custom_call.1} parent=43 // pred_region
              %s222 = ssub.s32 256, 1
              loop: start=0, step=1, limit=1
              $region53: #{tpu_custom_call.1} parent=51 // loop_pre_header
                _
              $region54: #{tpu_custom_call.1} parent=51 // loop_header
                %s224 = sphi 0, %s228
                %p225 = scmp.ge.s32.totalorder %s224, 1
                %s229 = sphi %s214, %s214
                %s230 = sphi %s212, %s212
              $region55: #{tpu_custom_call.1} parent=51 // loop_header_branch
                %227 = sbr.rel (%p225) target = $region59
              $region56: #{tpu_custom_call.1} parent=51 // loop_body
                %v231 = vld [vmem:[%s229] sm:%s222]
                %232 = vst [vmem:[%s230] sm:%s222] %v231
                %v233 = vld [vmem:[%s229 + $0x10] sm:%s222]
                %234 = vst [vmem:[%s230 + $0x8] sm:%s222] %v233
                %v235 = vld [vmem:[%s229 + $0x20] sm:%s222]
                %236 = vst [vmem:[%s230 + $0x10] sm:%s222] %v235
                %v237 = vld [vmem:[%s229 + $0x30] sm:%s222]
                %238 = vst [vmem:[%s230 + $0x18] sm:%s222] %v237
              $region57: #{tpu_custom_call.1} parent=51 // loop_footer
                %s228 = sadd.s32 1, %s224
              $region58: #{tpu_custom_call.1} parent=51 // loop_footer_branch
                %223 = sbr.rel target = $region54
              $region59: #{tpu_custom_call.1} parent=51 // loop_exit
                _
            $region52: #{tpu_custom_call.1} parent=43 // pred_fallthru
              _
          $region44: #{tpu_custom_call.1} parent=39 // pred_fallthru
            _
          %259 = vnop
        $region40: #{tpu_custom_call.1} parent=35 // pred_fallthru
          _
      $region36: #{tpu_custom_call.1} parent=5 // pred_fallthru
        _
      %p260 = scmp.le.s32.totalorder 1, %s15
      %p261 = scmp.lt.s32.totalorder %s15, 3
      %p262 = pnand %p260, %p261
      %p263 = pneg %p262
      // Predicated region
      $region75: #{tpu_custom_call.1} parent=5 // pred_check
        _
      $region76: #{tpu_custom_call.1} parent=5 // pred_check_branch
        %265 = sbr.rel (%p262) target = $region78
      $region77: #{tpu_custom_call.1} parent=5 // pred_region
        %s266 = ssub.s32 %s15, 1
        %s267 = sand.u32 %s28, 1
        %s268 = sand.u32 %s28, 1
        %s269 = smul.addr %s268, 32
        %s270 = scalar_lea.vmem [#allocation2], %s269
        // Predicated region
        $region79: #{tpu_custom_call.1} parent=77 // pred_check
          %p271 = pneg %p41
        $region80: #{tpu_custom_call.1} parent=77 // pred_check_branch
          %273 = sbr.rel (%p271) target = $region82
        $region81: #{tpu_custom_call.1} parent=77 // pred_region
          _
        $region82: #{tpu_custom_call.1} parent=77 // pred_fallthru
          _
        %s274 = sand.u32 %s28, 1
        %s275 = sand.u32 %s28, 1
        %s276 = smul.addr %s275, 32
        %s277 = scalar_lea.vmem [#allocation2], %s276
        %p278 = pneg %p41
        %p279 = pneg %p38
        %p280 = pneg %p62
        %p281 = pneg %p59
        %p282 = pneg %p83
        %p283 = pneg %p80
        %p284 = pneg %p104
        %p285 = pneg %p101
        %p286 = pneg %p125
        %p287 = pneg %p122
        %p288 = pneg %p146
        %p289 = pneg %p143
        %p290 = pneg %p172
        %p291 = pneg %p169
        %s292 = sand.u32 %s159, 1
        %s293 = scalar_lea.sflag [#allocation4], %s292
        %s294 = sand.u32 %s159, 1
        %s295 = smul.addr %s294, 32
        %s296 = scalar_lea.vmem [#allocation3], %s295
        %v297 = vld [vmem:[%s270] sm:$0xff]
        %v298 = vld [vmem:[%s270 + $0x8] sm:$0xff]
        %v299 = vld [vmem:[%s270 + $0x10] sm:$0xff]
        %v300 = vld [vmem:[%s270 + $0x18] sm:$0xff]
        %v301 = vld [vmem:[%s1] sm:$0xff]
        %v302 = vld [vmem:[%s1 + $0x8] sm:$0xff]
        %v303 = vld [vmem:[%s1 + $0x10] sm:$0xff]
        %v304 = vld [vmem:[%s1 + $0x18] sm:$0xff]
        %v305 = vld [vmem:[%s1 + $0x20] sm:$0xff]
        %v306 = vld [vmem:[%s1 + $0x28] sm:$0xff]
        %v307 = vld [vmem:[%s1 + $0x30] sm:$0xff]
        %v308 = vld [vmem:[%s1 + $0x38] sm:$0xff]
        %v309 = vld [vmem:[%s1 + $0x40] sm:$0xff]
        %v310 = vld [vmem:[%s1 + $0x48] sm:$0xff]
        %v311 = vld [vmem:[%s2] sm:$0xff]
        %v312 = vld [vmem:[%s2 + $0x8] sm:$0xff]
        %v313 = vld [vmem:[%s2 + $0x10] sm:$0xff]
        %v314 = vld [vmem:[%s2 + $0x18] sm:$0xff]
        %v315 = vld [vmem:[%s2 + $0x20] sm:$0xff]
        %v316 = vld [vmem:[%s2 + $0x28] sm:$0xff]
        %v317 = vld [vmem:[%s2 + $0x30] sm:$0xff]
        %v318 = vld [vmem:[%s2 + $0x38] sm:$0xff]
        %v319 = vld [vmem:[%s2 + $0x40] sm:$0xff]
        %v320 = vld [vmem:[%s2 + $0x48] sm:$0xff]
        %322 = vset.pattern.permute.xlu0 0
        %323 = vperm.xlu0 %322, %v311
        %v324 = vpop.permute.xlu0 %323
        %327 = vset.pattern.permute.xlu0 0
        %328 = vperm.xlu0 %327, %v312
        %v329 = vpop.permute.xlu0 %328
        %332 = vset.pattern.permute.xlu0 0
        %333 = vperm.xlu0 %332, %v313
        %v334 = vpop.permute.xlu0 %333
        %337 = vset.pattern.permute.xlu0 0
        %338 = vperm.xlu0 %337, %v314
        %v339 = vpop.permute.xlu0 %338
        %342 = vset.pattern.permute.xlu0 0
        %343 = vperm.xlu0 %342, %v315
        %v344 = vpop.permute.xlu0 %343
        %347 = vset.pattern.permute.xlu0 0
        %348 = vperm.xlu0 %347, %v316
        %v349 = vpop.permute.xlu0 %348
        %352 = vset.pattern.permute.xlu0 0
        %353 = vperm.xlu0 %352, %v317
        %v354 = vpop.permute.xlu0 %353
        %357 = vset.pattern.permute.xlu0 0
        %358 = vperm.xlu0 %357, %v318
        %v359 = vpop.permute.xlu0 %358
        %362 = vset.pattern.permute.xlu0 0
        %363 = vperm.xlu0 %362, %v319
        %v364 = vpop.permute.xlu0 %363
        %367 = vset.pattern.permute.xlu0 0
        %368 = vperm.xlu0 %367, %v320
        %v369 = vpop.permute.xlu0 %368
        %vm371 = vcmask 261120
        %v373 = vsel %vm371, %v301, 0
        %v376 = vsel %vm371, %v302, 0
        %v379 = vsel %vm371, %v303, 0
        %v382 = vsel %vm371, %v304, 0
        %v385 = vsel %vm371, %v305, 0
        %v388 = vsel %vm371, %v306, 0
        %v391 = vsel %vm371, %v307, 0
        %v394 = vsel %vm371, %v308, 0
        %v397 = vsel %vm371, %v309, 0
        %v400 = vsel %vm371, %v310, 0
        %402 = vmatprep.subr.mxu0 0.0
        %403 = vmatpush1.msra.mxu0 0.0
        %404 = vmatprep.subr.mxu0 0.0
        %405 = vmatpush1.msra.mxu0 0.0
        %406 = vmatprep.subr.mxu0 0.0
        %407 = vmatpush1.msra.mxu0 0.0
        %408 = vmatprep.subr.mxu0 0.0
        %409 = vmatpush1.msra.mxu0 0.0
        %410 = vmatprep.subr.mxu0 0.0
        %411 = vmatpush1.msra.mxu0 0.0
        %412 = vmatprep.subr.mxu0 0.0
        %413 = vmatpush1.msra.mxu0 0.0
        %414 = vmatprep.subr.mxu0 0.0
        %415 = vmatpush1.msra.mxu0 0.0
        %416 = vmatprep.subr.mxu0 0.0
        %417 = vmatpush1.msra.mxu0 0.0
        %418 = vmatprep.subr.mxu0 0.0
        %419 = vmatpush1.msra.mxu0 0.0
        %420 = vmatprep.subr.mxu0 0.0
        %421 = vmatpush1.msra.mxu0 0.0
        %422 = vmatprep.subr.mxu0 0.0
        %423 = vmatpush1.msra.mxu0 0.0
        %424 = vmatprep.subr.mxu0 0.0
        %425 = vmatpush1.msra.mxu0 0.0
        %426 = vmatprep.subr.mxu0 0.0
        %427 = vmatpush1.msra.mxu0 %v300
        %428 = vmatprep.subr.mxu0 0.0
        %429 = vmatpush1.msra.mxu0 %v299
        %430 = vmatprep.subr.mxu0 0.0
        %431 = vmatpush1.msra.mxu0 %v298
        %432 = vmatprep.subr.mxu0 0.0
        %433 = vmatpush1.msra.mxu0 %v297
        %434 = vmatprep.subr.mxu0 0.0
        %435 = vmatpush2.msra.mxu0 0.0
        %436 = vmatprep.subr.mxu0 0.0
        %437 = vmatpush2.msra.mxu0 0.0
        %438 = vmatprep.subr.mxu0 0.0
        %439 = vmatpush2.msra.mxu0 0.0
        %440 = vmatprep.subr.mxu0 0.0
        %441 = vmatpush2.msra.mxu0 0.0
        %442 = vmatprep.subr.mxu0 0.0
        %443 = vmatpush2.msra.mxu0 0.0
        %444 = vmatprep.subr.mxu0 0.0
        %445 = vmatpush2.msra.mxu0 0.0
        %446 = vmatprep.subr.mxu0 0.0
        %447 = vmatpush2.msra.mxu0 0.0
        %448 = vmatprep.subr.mxu0 0.0
        %449 = vmatpush2.msra.mxu0 0.0
        %450 = vmatprep.subr.mxu0 0.0
        %451 = vmatpush2.msra.mxu0 0.0
        %452 = vmatprep.subr.mxu0 0.0
        %453 = vmatpush2.msra.mxu0 0.0
        %454 = vmatprep.subr.mxu0 0.0
        %455 = vmatpush2.msra.mxu0 0.0
        %456 = vmatprep.subr.mxu0 0.0
        %457 = vmatpush2.msra.mxu0 0.0
        %458 = vmatprep.subr.mxu0 0.0
        %459 = vmatpush2.msra.mxu0 0.0
        %460 = vmatprep.subr.mxu0 0.0
        %461 = vmatpush2.msra.mxu0 0.0
        %462 = vmatprep.subr.mxu0 0.0
        %463 = vmatpush2.msra.mxu0 0.0
        %464 = vmatprep.subr.mxu0 0.0
        %465 = vmatpush2.msra.mxu0 0.0
        %466 = vmatprep.mubr.f32.mxu0 0.0
        %467 = vmatmul.mubr.f32.gmra.mxu0 %v373
        %v468 = vpop.f32.mrf.mxu0
        %v469 = vadd.f32 %v324, %v468
        %v470 = vpop.f32.mrf.mxu0
        %471 = vmatprep.mubr.f32.mxu0 0.0
        %472 = vmatmul.mubr.f32.gmra.mxu0 %v376
        %v473 = vpop.f32.mrf.mxu0
        %v474 = vadd.f32 %v329, %v473
        %v475 = vpop.f32.mrf.mxu0
        %476 = vmatprep.mubr.f32.mxu0 0.0
        %477 = vmatmul.mubr.f32.gmra.mxu0 %v379
        %v478 = vpop.f32.mrf.mxu0
        %v479 = vadd.f32 %v334, %v478
        %v480 = vpop.f32.mrf.mxu0
        %481 = vmatprep.mubr.f32.mxu0 0.0
        %482 = vmatmul.mubr.f32.gmra.mxu0 %v382
        %v483 = vpop.f32.mrf.mxu0
        %v484 = vadd.f32 %v339, %v483
        %v485 = vpop.f32.mrf.mxu0
        %486 = vmatprep.mubr.f32.mxu0 0.0
        %487 = vmatmul.mubr.f32.gmra.mxu0 %v385
        %v488 = vpop.f32.mrf.mxu0
        %v489 = vadd.f32 %v344, %v488
        %v490 = vpop.f32.mrf.mxu0
        %491 = vmatprep.mubr.f32.mxu0 0.0
        %492 = vmatmul.mubr.f32.gmra.mxu0 %v388
        %v493 = vpop.f32.mrf.mxu0
        %v494 = vadd.f32 %v349, %v493
        %v495 = vpop.f32.mrf.mxu0
        %496 = vmatprep.mubr.f32.mxu0 0.0
        %497 = vmatmul.mubr.f32.gmra.mxu0 %v391
        %v498 = vpop.f32.mrf.mxu0
        %v499 = vadd.f32 %v354, %v498
        %v500 = vpop.f32.mrf.mxu0
        %501 = vmatprep.mubr.f32.mxu0 0.0
        %502 = vmatmul.mubr.f32.gmra.mxu0 %v394
        %v503 = vpop.f32.mrf.mxu0
        %v504 = vadd.f32 %v359, %v503
        %v505 = vpop.f32.mrf.mxu0
        %506 = vmatprep.mubr.f32.mxu0 0.0
        %507 = vmatmul.mubr.f32.gmra.mxu0 %v397
        %v508 = vpop.f32.mrf.mxu0
        %v509 = vadd.f32 %v364, %v508
        %v510 = vpop.f32.mrf.mxu0
        %511 = vmatprep.mubr.f32.mxu0 0.0
        %512 = vmatmul.mubr.f32.gmra.mxu0 %v400
        %v513 = vpop.f32.mrf.mxu0
        %v514 = vadd.f32 %v369, %v513
        %v515 = vpop.f32.mrf.mxu0
        %516 = vdwg.mxu0
        %v517 = vtanh.pop %v469
        %v518 = vtanh.pop %v474
        %v519 = vtanh.pop %v479
        %v520 = vtanh.pop %v484
        %v521 = vtanh.pop %v489
        %v522 = vtanh.pop %v494
        %v523 = vtanh.pop %v499
        %v524 = vtanh.pop %v504
        %v525 = vtanh.pop %v509
        %v526 = vtanh.pop %v514
        %v527 = vmul.f32 %v517, %v517
        %v528 = vmul.f32 %v518, %v518
        %v529 = vmul.f32 %v519, %v519
        %v530 = vmul.f32 %v520, %v520
        %v531 = vsub.f32 1.0, %v527
        %v532 = vsub.f32 1.0, %v528
        %v533 = vsub.f32 1.0, %v529
        %v534 = vsub.f32 1.0, %v530
        %v535 = vmul.f32 %v521, %v521
        %v536 = vmul.f32 %v522, %v522
        %v537 = vmul.f32 %v523, %v523
        %v538 = vmul.f32 %v524, %v524
        %v539 = vmul.f32 %v525, %v525
        %v540 = vmul.f32 %v526, %v526
        %v541 = vsub.f32 1.0, %v535
        %v542 = vsub.f32 1.0, %v536
        %v543 = vsub.f32 1.0, %v537
        %v544 = vsub.f32 1.0, %v538
        %v545 = vsub.f32 1.0, %v539
        %v546 = vsub.f32 1.0, %v540
        %v547 = vld [vmem:[%s3] sm:$0xff]
        %v548 = vld [vmem:[%s3 + $0x8] sm:$0xff]
        %v549 = vld [vmem:[%s3 + $0x10] sm:$0xff]
        %v550 = vld [vmem:[%s3 + $0x18] sm:$0xff]
        %v551 = vld [vmem:[%s3 + $0x20] sm:$0xff]
        %v552 = vld [vmem:[%s3 + $0x28] sm:$0xff]
        %v553 = vld [vmem:[%s3 + $0x30] sm:$0xff]
        %v554 = vld [vmem:[%s3 + $0x38] sm:$0xff]
        %v555 = vld [vmem:[%s3 + $0x40] sm:$0xff]
        %v556 = vld [vmem:[%s3 + $0x48] sm:$0xff]
        %v557 = vld [vmem:[%s3 + $0x50] sm:$0xff]
        %v558 = vld [vmem:[%s3 + $0x58] sm:$0xff]
        %v560 = vsel %vm371, %v547, 0
        %v563 = vsel %vm371, %v548, 0
        %v566 = vsel %vm371, %v549, 0
        %v569 = vsel %vm371, %v550, 0
        %v572 = vsel %vm371, %v551, 0
        %v575 = vsel %vm371, %v552, 0
        %v578 = vsel %vm371, %v553, 0
        %v581 = vsel %vm371, %v554, 0
        %v584 = vsel %vm371, %v555, 0
        %v587 = vsel %vm371, %v556, 0
        %v590 = vsel %vm371, %v557, 0
        %v593 = vsel %vm371, %v558, 0
        %595 = vmatprep.subr.mxu0 0.0
        %596 = vmatpush1.msra.mxu0 0.0
        %597 = vmatprep.subr.mxu0 0.0
        %598 = vmatpush1.msra.mxu0 0.0
        %599 = vmatprep.subr.mxu0 0.0
        %600 = vmatpush1.msra.mxu0 0.0
        %601 = vmatprep.subr.mxu0 0.0
        %602 = vmatpush1.msra.mxu0 0.0
        %603 = vmatprep.subr.mxu0 0.0
        %604 = vmatpush1.msra.mxu0 0.0
        %605 = vmatprep.subr.mxu0 0.0
        %606 = vmatpush1.msra.mxu0 0.0
        %607 = vmatprep.subr.mxu0 0.0
        %608 = vmatpush1.msra.mxu0 0.0
        %609 = vmatprep.subr.mxu0 0.0
        %610 = vmatpush1.msra.mxu0 0.0
        %611 = vmatprep.subr.mxu0 0.0
        %612 = vmatpush1.msra.mxu0 0.0
        %613 = vmatprep.subr.mxu0 0.0
        %614 = vmatpush1.msra.mxu0 0.0
        %615 = vmatprep.subr.mxu0 0.0
        %616 = vmatpush1.msra.mxu0 0.0
        %617 = vmatprep.subr.mxu0 0.0
        %618 = vmatpush1.msra.mxu0 0.0
        %619 = vmatprep.subr.mxu0 0.0
        %620 = vmatpush1.msra.mxu0 %v534
        %621 = vmatprep.subr.mxu0 0.0
        %622 = vmatpush1.msra.mxu0 %v533
        %623 = vmatprep.subr.mxu0 0.0
        %624 = vmatpush1.msra.mxu0 %v532
        %625 = vmatprep.subr.mxu0 0.0
        %626 = vmatpush1.msra.mxu0 %v531
        %627 = vmatprep.subr.mxu0 0.0
        %628 = vmatpush2.msra.mxu0 0.0
        %629 = vmatprep.subr.mxu0 0.0
        %630 = vmatpush2.msra.mxu0 0.0
        %631 = vmatprep.subr.mxu0 0.0
        %632 = vmatpush2.msra.mxu0 0.0
        %633 = vmatprep.subr.mxu0 0.0
        %634 = vmatpush2.msra.mxu0 0.0
        %635 = vmatprep.subr.mxu0 0.0
        %636 = vmatpush2.msra.mxu0 0.0
        %637 = vmatprep.subr.mxu0 0.0
        %638 = vmatpush2.msra.mxu0 0.0
        %639 = vmatprep.subr.mxu0 0.0
        %640 = vmatpush2.msra.mxu0 0.0
        %641 = vmatprep.subr.mxu0 0.0
        %642 = vmatpush2.msra.mxu0 0.0
        %643 = vmatprep.subr.mxu0 0.0
        %644 = vmatpush2.msra.mxu0 0.0
        %645 = vmatprep.subr.mxu0 0.0
        %646 = vmatpush2.msra.mxu0 0.0
        %647 = vmatprep.subr.mxu0 0.0
        %648 = vmatpush2.msra.mxu0 0.0
        %649 = vmatprep.subr.mxu0 0.0
        %650 = vmatpush2.msra.mxu0 0.0
        %651 = vmatprep.subr.mxu0 0.0
        %652 = vmatpush2.msra.mxu0 0.0
        %653 = vmatprep.subr.mxu0 0.0
        %654 = vmatpush2.msra.mxu0 0.0
        %655 = vmatprep.subr.mxu0 0.0
        %656 = vmatpush2.msra.mxu0 0.0
        %657 = vmatprep.subr.mxu0 0.0
        %658 = vmatpush2.msra.mxu0 0.0
        %659 = vmatprep.mubr.f32.mxu0 0.0
        %660 = vmatmul.mubr.f32.gmra.mxu0 %v560
        %v661 = vpop.f32.mrf.mxu0
        %v662 = vadd.f32 0.0, %v661
        %v663 = vpop.f32.mrf.mxu0
        %664 = vmatprep.mubr.f32.mxu0 0.0
        %665 = vmatmul.mubr.f32.gmra.mxu0 %v563
        %v666 = vpop.f32.mrf.mxu0
        %v667 = vadd.f32 0.0, %v666
        %v668 = vpop.f32.mrf.mxu0
        %669 = vmatprep.mubr.f32.mxu0 0.0
        %670 = vmatmul.mubr.f32.gmra.mxu0 %v566
        %v671 = vpop.f32.mrf.mxu0
        %v672 = vadd.f32 0.0, %v671
        %v673 = vpop.f32.mrf.mxu0
        %674 = vmatprep.mubr.f32.mxu0 0.0
        %675 = vmatmul.mubr.f32.gmra.mxu0 %v569
        %v676 = vpop.f32.mrf.mxu0
        %v677 = vadd.f32 0.0, %v676
        %v678 = vpop.f32.mrf.mxu0
        %679 = vmatprep.mubr.f32.mxu0 0.0
        %680 = vmatmul.mubr.f32.gmra.mxu0 %v572
        %v681 = vpop.f32.mrf.mxu0
        %v682 = vadd.f32 0.0, %v681
        %v683 = vpop.f32.mrf.mxu0
        %684 = vmatprep.mubr.f32.mxu0 0.0
        %685 = vmatmul.mubr.f32.gmra.mxu0 %v575
        %v686 = vpop.f32.mrf.mxu0
        %v687 = vadd.f32 0.0, %v686
        %v688 = vpop.f32.mrf.mxu0
        %689 = vmatprep.mubr.f32.mxu0 0.0
        %690 = vmatmul.mubr.f32.gmra.mxu0 %v578
        %v691 = vpop.f32.mrf.mxu0
        %v692 = vadd.f32 0.0, %v691
        %v693 = vpop.f32.mrf.mxu0
        %694 = vmatprep.mubr.f32.mxu0 0.0
        %695 = vmatmul.mubr.f32.gmra.mxu0 %v581
        %v696 = vpop.f32.mrf.mxu0
        %v697 = vadd.f32 0.0, %v696
        %v698 = vpop.f32.mrf.mxu0
        %699 = vmatprep.mubr.f32.mxu0 0.0
        %700 = vmatmul.mubr.f32.gmra.mxu0 %v584
        %v701 = vpop.f32.mrf.mxu0
        %v702 = vadd.f32 0.0, %v701
        %v703 = vpop.f32.mrf.mxu0
        %704 = vmatprep.mubr.f32.mxu0 0.0
        %705 = vmatmul.mubr.f32.gmra.mxu0 %v587
        %v706 = vpop.f32.mrf.mxu0
        %v707 = vadd.f32 0.0, %v706
        %v708 = vpop.f32.mrf.mxu0
        %709 = vmatprep.mubr.f32.mxu0 0.0
        %710 = vmatmul.mubr.f32.gmra.mxu0 %v590
        %v711 = vpop.f32.mrf.mxu0
        %v712 = vadd.f32 0.0, %v711
        %v713 = vpop.f32.mrf.mxu0
        %714 = vmatprep.mubr.f32.mxu0 0.0
        %715 = vmatmul.mubr.f32.gmra.mxu0 %v593
        %v716 = vpop.f32.mrf.mxu0
        %v717 = vadd.f32 0.0, %v716
        %v718 = vpop.f32.mrf.mxu0
        %719 = vdwg.mxu0
        %v720 = vmul.f32 %v541, %v662
        %v721 = vmul.f32 %v542, %v667
        %v722 = vmul.f32 %v543, %v672
        %v723 = vmul.f32 %v544, %v677
        %v724 = vmul.f32 %v545, %v682
        %v725 = vmul.f32 %v546, %v687
        %v726 = vmul.f32 %v541, %v692
        %v727 = vmul.f32 %v542, %v697
        %v728 = vmul.f32 %v543, %v702
        %v729 = vmul.f32 %v544, %v707
        %v730 = vmul.f32 %v545, %v712
        %v731 = vmul.f32 %v546, %v717
        %v732 = vld [vmem:[%s4] sm:$0xff]
        %v733 = vld [vmem:[%s4 + $0x8] sm:$0xff]
        %v734 = vld [vmem:[%s4 + $0x10] sm:$0xff]
        %v735 = vld [vmem:[%s4 + $0x18] sm:$0xff]
        %v736 = vld [vmem:[%s5] sm:$0xff]
        %v737 = vld [vmem:[%s5 + $0x8] sm:$0xff]
        %v738 = vld [vmem:[%s5 + $0x10] sm:$0xff]
        %v739 = vld [vmem:[%s5 + $0x18] sm:$0xff]
        %vm740 = vcmask 392192
        %v742 = vsel %vm740, %v736, 0
        %v745 = vsel %vm740, %v737, 0
        %v748 = vsel %vm740, %v738, 0
        %v751 = vsel %vm740, %v739, 0
        %753 = vmatprep.subr.mxu0 0.0
        %754 = vmatpush1.msra.mxu0 0.0
        %755 = vmatprep.subr.mxu0 0.0
        %756 = vmatpush1.msra.mxu0 0.0
        %757 = vmatprep.subr.mxu0 0.0
        %758 = vmatpush1.msra.mxu0 0.0
        %759 = vmatprep.subr.mxu0 0.0
        %760 = vmatpush1.msra.mxu0 0.0
        %761 = vmatprep.subr.mxu0 0.0
        %762 = vmatpush1.msra.mxu0 0.0
        %763 = vmatprep.subr.mxu0 0.0
        %764 = vmatpush1.msra.mxu0 0.0
        %765 = vmatprep.subr.mxu0 0.0
        %766 = vmatpush1.msra.mxu0 0.0
        %767 = vmatprep.subr.mxu0 0.0
        %768 = vmatpush1.msra.mxu0 0.0
        %769 = vmatprep.subr.mxu0 0.0
        %770 = vmatpush1.msra.mxu0 0.0
        %771 = vmatprep.subr.mxu0 0.0
        %772 = vmatpush1.msra.mxu0 0.0
        %773 = vmatprep.subr.mxu0 0.0
        %774 = vmatpush1.msra.mxu0 %v731
        %775 = vmatprep.subr.mxu0 0.0
        %776 = vmatpush1.msra.mxu0 %v730
        %777 = vmatprep.subr.mxu0 0.0
        %778 = vmatpush1.msra.mxu0 %v729
        %779 = vmatprep.subr.mxu0 0.0
        %780 = vmatpush1.msra.mxu0 %v728
        %781 = vmatprep.subr.mxu0 0.0
        %782 = vmatpush1.msra.mxu0 %v727
        %783 = vmatprep.subr.mxu0 0.0
        %784 = vmatpush1.msra.mxu0 %v726
        %785 = vmatprep.subr.mxu0 0.0
        %786 = vmatpush2.msra.mxu0 0.0
        %787 = vmatprep.subr.mxu0 0.0
        %788 = vmatpush2.msra.mxu0 0.0
        %789 = vmatprep.subr.mxu0 0.0
        %790 = vmatpush2.msra.mxu0 0.0
        %791 = vmatprep.subr.mxu0 0.0
        %792 = vmatpush2.msra.mxu0 0.0
        %793 = vmatprep.subr.mxu0 0.0
        %794 = vmatpush2.msra.mxu0 0.0
        %795 = vmatprep.subr.mxu0 0.0
        %796 = vmatpush2.msra.mxu0 0.0
        %797 = vmatprep.subr.mxu0 0.0
        %798 = vmatpush2.msra.mxu0 0.0
        %799 = vmatprep.subr.mxu0 0.0
        %800 = vmatpush2.msra.mxu0 0.0
        %801 = vmatprep.subr.mxu0 0.0
        %802 = vmatpush2.msra.mxu0 0.0
        %803 = vmatprep.subr.mxu0 0.0
        %804 = vmatpush2.msra.mxu0 0.0
        %805 = vmatprep.subr.mxu0 0.0
        %806 = vmatpush2.msra.mxu0 0.0
        %807 = vmatprep.subr.mxu0 0.0
        %808 = vmatpush2.msra.mxu0 0.0
        %809 = vmatprep.subr.mxu0 0.0
        %810 = vmatpush2.msra.mxu0 0.0
        %811 = vmatprep.subr.mxu0 0.0
        %812 = vmatpush2.msra.mxu0 0.0
        %813 = vmatprep.subr.mxu0 0.0
        %814 = vmatpush2.msra.mxu0 0.0
        %815 = vmatprep.subr.mxu0 0.0
        %816 = vmatpush2.msra.mxu0 0.0
        %817 = vmatprep.mubr.f32.mxu0 0.0
        %818 = vmatmul.mubr.f32.gmra.mxu0 %v742
        %v819 = vpop.f32.mrf.mxu0
        %v820 = vadd.f32 0.0, %v819
        %v821 = vpop.f32.mrf.mxu0
        %822 = vmatprep.mubr.f32.mxu0 0.0
        %823 = vmatmul.mubr.f32.gmra.mxu0 %v745
        %v824 = vpop.f32.mrf.mxu0
        %v825 = vadd.f32 0.0, %v824
        %v826 = vpop.f32.mrf.mxu0
        %827 = vmatprep.mubr.f32.mxu0 0.0
        %828 = vmatmul.mubr.f32.gmra.mxu0 %v748
        %v829 = vpop.f32.mrf.mxu0
        %v830 = vadd.f32 0.0, %v829
        %v831 = vpop.f32.mrf.mxu0
        %832 = vmatprep.mubr.f32.mxu0 0.0
        %833 = vmatmul.mubr.f32.gmra.mxu0 %v751
        %v834 = vpop.f32.mrf.mxu0
        %v835 = vadd.f32 0.0, %v834
        %v836 = vpop.f32.mrf.mxu0
        %837 = vdwg.mxu0
        %v839 = vsel %vm740, %v732, 0
        %v842 = vsel %vm740, %v733, 0
        %v845 = vsel %vm740, %v734, 0
        %v848 = vsel %vm740, %v735, 0
        %850 = vmatprep.subr.mxu0 0.0
        %851 = vmatpush1.msra.mxu0 0.0
        %852 = vmatprep.subr.mxu0 0.0
        %853 = vmatpush1.msra.mxu0 0.0
        %854 = vmatprep.subr.mxu0 0.0
        %855 = vmatpush1.msra.mxu0 0.0
        %856 = vmatprep.subr.mxu0 0.0
        %857 = vmatpush1.msra.mxu0 0.0
        %858 = vmatprep.subr.mxu0 0.0
        %859 = vmatpush1.msra.mxu0 0.0
        %860 = vmatprep.subr.mxu0 0.0
        %861 = vmatpush1.msra.mxu0 0.0
        %862 = vmatprep.subr.mxu0 0.0
        %863 = vmatpush1.msra.mxu0 0.0
        %864 = vmatprep.subr.mxu0 0.0
        %865 = vmatpush1.msra.mxu0 0.0
        %866 = vmatprep.subr.mxu0 0.0
        %867 = vmatpush1.msra.mxu0 0.0
        %868 = vmatprep.subr.mxu0 0.0
        %869 = vmatpush1.msra.mxu0 0.0
        %870 = vmatprep.subr.mxu0 0.0
        %871 = vmatpush1.msra.mxu0 %v725
        %872 = vmatprep.subr.mxu0 0.0
        %873 = vmatpush1.msra.mxu0 %v724
        %874 = vmatprep.subr.mxu0 0.0
        %875 = vmatpush1.msra.mxu0 %v723
        %876 = vmatprep.subr.mxu0 0.0
        %877 = vmatpush1.msra.mxu0 %v722
        %878 = vmatprep.subr.mxu0 0.0
        %879 = vmatpush1.msra.mxu0 %v721
        %880 = vmatprep.subr.mxu0 0.0
        %881 = vmatpush1.msra.mxu0 %v720
        %882 = vmatprep.subr.mxu0 0.0
        %883 = vmatpush2.msra.mxu0 0.0
        %884 = vmatprep.subr.mxu0 0.0
        %885 = vmatpush2.msra.mxu0 0.0
        %886 = vmatprep.subr.mxu0 0.0
        %887 = vmatpush2.msra.mxu0 0.0
        %888 = vmatprep.subr.mxu0 0.0
        %889 = vmatpush2.msra.mxu0 0.0
        %890 = vmatprep.subr.mxu0 0.0
        %891 = vmatpush2.msra.mxu0 0.0
        %892 = vmatprep.subr.mxu0 0.0
        %893 = vmatpush2.msra.mxu0 0.0
        %894 = vmatprep.subr.mxu0 0.0
        %895 = vmatpush2.msra.mxu0 0.0
        %896 = vmatprep.subr.mxu0 0.0
        %897 = vmatpush2.msra.mxu0 0.0
        %898 = vmatprep.subr.mxu0 0.0
        %899 = vmatpush2.msra.mxu0 0.0
        %900 = vmatprep.subr.mxu0 0.0
        %901 = vmatpush2.msra.mxu0 0.0
        %902 = vmatprep.subr.mxu0 0.0
        %903 = vmatpush2.msra.mxu0 0.0
        %904 = vmatprep.subr.mxu0 0.0
        %905 = vmatpush2.msra.mxu0 0.0
        %906 = vmatprep.subr.mxu0 0.0
        %907 = vmatpush2.msra.mxu0 0.0
        %908 = vmatprep.subr.mxu0 0.0
        %909 = vmatpush2.msra.mxu0 0.0
        %910 = vmatprep.subr.mxu0 0.0
        %911 = vmatpush2.msra.mxu0 0.0
        %912 = vmatprep.subr.mxu0 0.0
        %913 = vmatpush2.msra.mxu0 0.0
        %914 = vmatprep.mubr.f32.mxu0 0.0
        %915 = vmatmul.mubr.f32.gmra.mxu0 %v839
        %v916 = vpop.f32.mrf.mxu0
        %v917 = vadd.f32 %v820, %v916
        %v918 = vpop.f32.mrf.mxu0
        %919 = vmatprep.mubr.f32.mxu0 0.0
        %920 = vmatmul.mubr.f32.gmra.mxu0 %v842
        %v921 = vpop.f32.mrf.mxu0
        %v922 = vadd.f32 %v825, %v921
        %v923 = vpop.f32.mrf.mxu0
        %924 = vmatprep.mubr.f32.mxu0 0.0
        %925 = vmatmul.mubr.f32.gmra.mxu0 %v845
        %v926 = vpop.f32.mrf.mxu0
        %v927 = vadd.f32 %v830, %v926
        %v928 = vpop.f32.mrf.mxu0
        %929 = vmatprep.mubr.f32.mxu0 0.0
        %930 = vmatmul.mubr.f32.gmra.mxu0 %v848
        %v931 = vpop.f32.mrf.mxu0
        %v932 = vadd.f32 %v835, %v931
        %v933 = vpop.f32.mrf.mxu0
        %934 = vdwg.mxu0
        %935 = vst [vmem:[%s296] sm:$0xff] %v917
        %936 = vst [vmem:[%s296 + $0x8] sm:$0xff] %v922
        %937 = vst [vmem:[%s296 + $0x10] sm:$0xff] %v927
        %938 = vst [vmem:[%s296 + $0x18] sm:$0xff] %v932
        %s939 = sand.u32 %s159, 1
        %s940 = scalar_lea.sflag [#allocation4], %s939
        %s941 = sand.u32 %s159, 1
        %s942 = smul.addr %s941, 32
        %s943 = scalar_lea.vmem [#allocation3], %s942
        // Predicated region
        $region83: #{tpu_custom_call.1} parent=77 // pred_check
          %p944 = pneg %p169
        $region84: #{tpu_custom_call.1} parent=77 // pred_check_branch
          %946 = sbr.rel (%p944) target = $region86
        $region85: #{tpu_custom_call.1} parent=77 // pred_region
          %s948 = ssub.s32 512, 512
          %949 = vsyncadd %s940, %s948
          %s950 = smul.addr %s20, 128
          %s951 = scalar_lea.hbm %s6, %s950
          %s952 = sshll.u32 %s943, 4
          %s953 = int_to_ptr.vmem [resolvable:$true] %s952
          %958 = dma.vmem_to_hbm [thread:$0]  %s953, 512, %s951, %s940, 128, 256, 8
        $region86: #{tpu_custom_call.1} parent=77 // pred_fallthru
          _
      $region78: #{tpu_custom_call.1} parent=5 // pred_fallthru
        _
      %p959 = scmp.le.s32.totalorder 2, %s15
      // Predicated region
      $region87: #{tpu_custom_call.1} parent=5 // pred_check
        %p960 = pneg %p959
      $region88: #{tpu_custom_call.1} parent=5 // pred_check_branch
        %962 = sbr.rel (%p960) target = $region90
      $region89: #{tpu_custom_call.1} parent=5 // pred_region
        %s963 = ssub.s32 %s15, 2
        // Predicated region
        $region91: #{tpu_custom_call.1} parent=89 // pred_check
          %p964 = pneg %p175
        $region92: #{tpu_custom_call.1} parent=89 // pred_check_branch
          %966 = sbr.rel (%p964) target = $region94
        $region93: #{tpu_custom_call.1} parent=89 // pred_region
          %s967 = sand.u32 %s160, 1
          %s968 = scalar_lea.sflag [#allocation4], %s967
          %s969 = sand.u32 %s160, 1
          %s970 = smul.addr %s969, 32
          %s971 = scalar_lea.vmem [#allocation3], %s970
          %972 = dma.done %s968, 512
        $region94: #{tpu_custom_call.1} parent=89 // pred_fallthru
          _
      $region90: #{tpu_custom_call.1} parent=5 // pred_fallthru
        _
    $region6: #{tpu_custom_call.1} parent=1 // loop_footer
      %s19 = sadd.s32 1, %s15
    $region7: #{tpu_custom_call.1} parent=1 // loop_footer_branch
      %14 = sbr.rel target = $region3
    $region8: #{tpu_custom_call.1} parent=1 // loop_exit
      _
    %973 = vsyncpa [#allocation4], 1
    %s974 = scalar_lea.sflag [#allocation4], 1
    %975 = vsyncpa %s974, 1

</llo_original>
